<compile_context>
chip_gen: v6e
topology: v6e:2x2x1
jax: 0.10.0
libtpu: 0.0.40
codegen_flags: <defaults>
</compile_context>

<pallas_src>
import numpy as np
import jax
import jax.numpy as jnp
from jax import lax
from jax.experimental import pallas as pl
from jax.experimental.pallas import tpu as pltpu


def _round_up(x, m):
    return (x + m - 1) // m * m


def _embedbag_fc_kernel(tiles_ref,              # SMEM (n_active,) int32: active vocab-tile ids
                        text_ref,               # (T_rows, 128) int32: lane-dense token ids
                        start_ref, end_ref,     # (TB, 1) int32: bag [start, end)
                        emb_ref,                # (TV, D_pad): one vocab tile of the table
                        w_ref,                  # (D_pad, C_pad): fc weight (transposed)
                        b_ref,                  # (1, C_pad): fc bias
                        out_ref,                # (TB, C_pad): lane-dense output tile
                        pooled_ref,             # scratch (TB, D_pad) f32
                        counts_ref):            # scratch (TB, TV) f32
    j = pl.program_id(1)
    nv = pl.num_programs(1)

    tb = pooled_ref.shape[0]
    tv = emb_ref.shape[0]
    n_chunks = text_ref.shape[0]                # 128 tokens per chunk

    @pl.when(j == 0)
    def _init():
        pooled_ref[...] = jnp.zeros_like(pooled_ref)

    starts = start_ref[...]                     # (TB, 1) int32
    ends = end_ref[...]                         # (TB, 1) int32

    # Vocab ids covered by this (active) tile: sublane axis of Hᵀ.
    base = tiles_ref[j] * tv
    vocab_col = base + lax.broadcasted_iota(jnp.int32, (tv, 128), 0)   # (TV, 128)
    lane_pos = lax.broadcasted_iota(jnp.int32, (tb, 128), 1)           # (TB, 128)

    # counts[b, v] = #tokens of bag b equal to vocab id (base + v). Exact:
    # bf16 0/1 operands, f32 MXU accumulation.
    counts_ref[...] = jnp.zeros_like(counts_ref)

    def chunk_body(c, carry):
        tok = text_ref[pl.ds(c, 1), :]                                  # (1, 128) int32
        h_t = (vocab_col == tok).astype(jnp.bfloat16)                   # (TV, 128) one-hotᵀ
        pos = c * 128 + lane_pos                                        # token positions
        s = ((pos >= starts) & (pos < ends)).astype(jnp.bfloat16)       # (TB, 128) indicator
        counts_ref[...] += lax.dot_general(                             # S @ Hᵀᵀ  (NT matmul)
            s, h_t, (((1,), (1,)), ((), ())),
            preferred_element_type=jnp.float32)
        return carry

    lax.fori_loop(0, n_chunks, chunk_body, 0, unroll=n_chunks <= 8)

    # Un-normalized bag sums for this vocab tile (table-native dtype matmul).
    pooled_ref[...] += jnp.dot(
        counts_ref[...].astype(emb_ref.dtype), emb_ref[...],
        preferred_element_type=jnp.float32)

    @pl.when(j == nv - 1)
    def _finalize():
        cnt = (ends - starts).astype(jnp.float32)                       # (TB, 1)
        inv = jnp.where(cnt > 0.0, 1.0 / cnt, 0.0)                      # empty bag -> 0 row
        pooled = pooled_ref[...] * inv                                  # mean pooling
        out_ref[...] = (
            jnp.dot(pooled.astype(w_ref.dtype), w_ref[...],
                    preferred_element_type=jnp.float32)
            + b_ref[...].astype(jnp.float32)
        ).astype(out_ref.dtype)


def text_classification_forward(text, offsets, emb_weight, fc_weight, fc_bias,
                                *, batch_tile=128, vocab_tile=512):
    """text: (T,) int token ids, offsets: (B,) bag start offsets,
    emb_weight: (V, D) (f32 or bf16), fc_weight: (C, D) [PyTorch layout],
    fc_bias: (C,).  Returns (B, C) f32."""
    text = jnp.asarray(text, jnp.int32)
    offsets = jnp.asarray(offsets, jnp.int32)
    num_tokens = int(text.shape[0])
    batch = int(offsets.shape[0])
    vocab_size, embed_dim = emb_weight.shape
    num_class = fc_weight.shape[0]

    # Padded, lane-dense, (8,128)/(16,128)-aligned layouts.
    tb = min(_round_up(batch_tile, 16), _round_up(batch, 16))   # MXU M dim (bf16-tile aligned)
    b_pad = _round_up(batch, tb)
    t_pad = _round_up(max(num_tokens, 1), 128)
    t_rows = t_pad // 128
    d_pad = _round_up(embed_dim, 128)
    c_pad = _round_up(num_class, 128)
    tv = min(_round_up(vocab_tile, 128), _round_up(vocab_size, 128))
    v_pad = _round_up(vocab_size, tv)
    n_tiles = v_pad // tv

    # Lane-dense token stream (padding token id 0 is never inside any bag).
    text_p = (jnp.zeros((t_pad,), jnp.int32).at[:num_tokens].set(text)
              .reshape(t_rows, 128))
    offsets_ext = jnp.concatenate([offsets, jnp.array([num_tokens], jnp.int32)])
    starts = jnp.full((b_pad, 1), num_tokens, jnp.int32).at[:batch, 0].set(
        offsets_ext[:batch])
    ends = jnp.full((b_pad, 1), num_tokens, jnp.int32).at[:batch, 0].set(
        offsets_ext[1:batch + 1])
    # Table and fc weights keep their native dtype (bf16 tables -> native MXU).
    emb_p = jnp.zeros((v_pad, d_pad), emb_weight.dtype).at[
        :vocab_size, :embed_dim].set(emb_weight)
    w_p = jnp.zeros((d_pad, c_pad), fc_weight.dtype).at[
        :embed_dim, :num_class].set(fc_weight.T)
    b_p = jnp.zeros((1, c_pad), jnp.float32).at[0, :num_class].set(
        fc_bias.astype(jnp.float32))

    # Block-sparse vocab-tile skipping: only visit tiles touched by `text`.
    try:
        tok_np = np.asarray(jax.device_get(text))
        tiles = (np.unique(tok_np // tv) if tok_np.size
                 else np.zeros((1,), np.int64))
        tiles = tiles[(tiles >= 0) & (tiles < n_tiles)]
        if tiles.size == 0:
            tiles = np.zeros((1,), np.int64)
    except Exception:
        # Traced `text` (wrapper under jit): fall back to visiting every tile.
        tiles = np.arange(n_tiles)
    active_tiles = jnp.asarray(tiles, jnp.int32)
    n_active = int(active_tiles.shape[0])

    grid = (b_pad // tb, n_active)

    grid_spec = pltpu.PrefetchScalarGridSpec(
        num_scalar_prefetch=1,                                       # active_tiles -> SMEM
        grid=grid,
        in_specs=[
            pl.BlockSpec((t_rows, 128), lambda i, j, ts: (0, 0)),    # token ids (lane-dense)
            pl.BlockSpec((tb, 1), lambda i, j, ts: (i, 0)),          # bag starts
            pl.BlockSpec((tb, 1), lambda i, j, ts: (i, 0)),          # bag ends
            pl.BlockSpec((tv, d_pad), lambda i, j, ts: (ts[j], 0)),  # active emb tile
            pl.BlockSpec((d_pad, c_pad), lambda i, j, ts: (0, 0)),   # fc weight
            pl.BlockSpec((1, c_pad), lambda i, j, ts: (0, 0)),       # fc bias
        ],
        out_specs=pl.BlockSpec((tb, c_pad), lambda i, j, ts: (i, 0)),
        scratch_shapes=[pltpu.VMEM((tb, d_pad), jnp.float32),        # pooled accumulator
                        pltpu.VMEM((tb, tv), jnp.float32)],          # per-tile counts
    )

    out_padded = pl.pallas_call(
        _embedbag_fc_kernel,
        out_shape=jax.ShapeDtypeStruct((b_pad, c_pad), jnp.float32),
        grid_spec=grid_spec,
        compiler_params=pltpu.CompilerParams(
            dimension_semantics=("parallel", "arbitrary"),
            vmem_limit_bytes=48 * 1024 * 1024),
    )(active_tiles, text_p, starts, ends, emb_p, w_p, b_p)

    return out_padded[:batch, :num_class]


def _reference(text, offsets, emb_weight, fc_weight, fc_bias):
    offsets_ext = jnp.concatenate(
        [offsets, jnp.array([text.shape[0]], jnp.int32)])
    pooled = []
    for b in range(offsets.shape[0]):
        s, e = int(offsets_ext[b]), int(offsets_ext[b + 1])
        pooled.append(jnp.mean(emb_weight[text[s:e]], axis=0))
    pooled = jnp.stack(pooled)
    return pooled @ fc_weight.T + fc_bias


if __name__ == "__main__":
    # Small synthetic shapes consistent with the module.
    vocab_size = 64
    embed_dim = 32
    num_class = 4
    batch = 4
    lengths = [3, 5, 2, 6]            # tokens per bag
    total_tokens = sum(lengths)

    key = jax.random.PRNGKey(0)
    k_emb, k_w, k_b, k_txt = jax.random.split(key, 4)

    # Deterministic parameter init (EmbeddingBag ~ N(0,1), Linear ~ U(-a, a)).
    emb_weight = jax.random.normal(k_emb, (vocab_size, embed_dim), jnp.float32)
    bound = 1.0 / (embed_dim ** 0.5)
    fc_weight = jax.random.uniform(k_w, (num_class, embed_dim), jnp.float32,
                                   -bound, bound)
    fc_bias = jax.random.uniform(k_b, (num_class,), jnp.float32, -bound, bound)

    text = jax.random.randint(k_txt, (total_tokens,), 0, vocab_size, jnp.int32)
    starts_py = [0] + [int(x) for x in jnp.cumsum(jnp.array(lengths))[:-1]]
    offsets = jnp.array(starts_py, jnp.int32)

    out = text_classification_forward(text, offsets, emb_weight, fc_weight,
                                      fc_bias)
    out = jax.block_until_ready(out)

    ref = _reference(text, offsets, emb_weight, fc_weight, fc_bias)
    assert out.shape == (batch, num_class)
    assert jnp.allclose(out, ref, atol=1e-4, rtol=1e-4), (
        float(jnp.max(jnp.abs(out - ref))))

    print("KERNEL_OK")
</pallas_src>

<mosaic_0001>
module attributes {stable_mosaic.version = 11 : i64} {
  func.func @_embedbag_fc_kernel(%arg0: i32, %arg1: i32, %arg2: memref<1xi32, #tpu.memory_space<smem>>, %arg3: memref<1x128xi32, #tpu.memory_space<vmem>>, %arg4: memref<16x1xi32, #tpu.memory_space<vmem>>, %arg5: memref<16x1xi32, #tpu.memory_space<vmem>>, %arg6: memref<128x128xf32, #tpu.memory_space<vmem>>, %arg7: memref<128x128xf32, #tpu.memory_space<vmem>>, %arg8: memref<1x128xf32, #tpu.memory_space<vmem>>, %arg9: memref<16x128xf32, #tpu.memory_space<vmem>>, %arg10: memref<16x128xf32, #tpu.memory_space<vmem>>, %arg11: memref<16x128xf32, #tpu.memory_space<vmem>>) attributes {dimension_semantics = [#tpu.dimension_semantics<parallel>, #tpu.dimension_semantics<arbitrary>], iteration_bounds = array<i64: 1, 1>, scalar_prefetch = 1 : i64, scratch_operands = 2 : i64, tpu.core_type = #tpu.core_type<tc>, window_params = [{pipeline_mode = #tpu.pipeline_mode<synchronous>, transform_indices = @transform_0, window_bounds = array<i64: 1, 128>}, {transform_indices = @transform_1, window_bounds = array<i64: 16, 1>}, {transform_indices = @transform_2, window_bounds = array<i64: 16, 1>}, {transform_indices = @transform_3, window_bounds = array<i64: 128, 128>}, {pipeline_mode = #tpu.pipeline_mode<synchronous>, transform_indices = @transform_4, window_bounds = array<i64: 128, 128>}, {pipeline_mode = #tpu.pipeline_mode<synchronous>, transform_indices = @transform_5, window_bounds = array<i64: 1, 128>}, {transform_indices = @transform_6, window_bounds = array<i64: 16, 128>}]} {
    %c0_i32 = arith.constant 0 : i32
    %0 = arith.cmpi eq, %arg1, %c0_i32 : i32
    %1 = arith.extui %0 : i1 to i32
    %c0_i32_0 = arith.constant 0 : i32
    %2 = arith.cmpi ne, %1, %c0_i32_0 : i32
    scf.if %2 {
      %cst_25 = arith.constant 0.000000e+00 : f32
      %45 = vector.broadcast %cst_25 : f32 to vector<16x128xf32>
      %c0_26 = arith.constant 0 : index
      %c0_27 = arith.constant 0 : index
      %46 = vector.load %arg10[%c0_26, %c0_27] : memref<16x128xf32, #tpu.memory_space<vmem>>, vector<16x128xf32>
      tpu.vector_store %arg10[%c0_26, %c0_27], %45 {strides = array<i32>} : memref<16x128xf32, #tpu.memory_space<vmem>>, vector<16x128xf32>,
    } else {
    }
    %c0 = arith.constant 0 : index
    %c0_1 = arith.constant 0 : index
    %3 = vector.load %arg4[%c0, %c0_1] : memref<16x1xi32, #tpu.memory_space<vmem>>, vector<16x1xi32>
    %c0_2 = arith.constant 0 : index
    %c0_3 = arith.constant 0 : index
    %4 = vector.load %arg5[%c0_2, %c0_3] : memref<16x1xi32, #tpu.memory_space<vmem>>, vector<16x1xi32>
    %5 = arith.index_cast %arg1 : i32 to index
    %6 = memref.load %arg2[%5] : memref<1xi32, #tpu.memory_space<smem>>
    %c128_i32 = arith.constant 128 : i32
    %7 = arith.muli %6, %c128_i32 : i32
    %8 = tpu.iota {dimensions = array<i32: 0>} : vector<128x128xi32>
    %9 = vector.broadcast %7 : i32 to vector<128x128xi32>
    %10 = arith.addi %9, %8 : vector<128x128xi32>
    %11 = tpu.iota {dimensions = array<i32: 1>} : vector<16x128xi32>
    %cst = arith.constant 0.000000e+00 : f32
    %12 = vector.broadcast %cst : f32 to vector<16x128xf32>
    %c0_4 = arith.constant 0 : index
    %c0_5 = arith.constant 0 : index
    %13 = vector.load %arg11[%c0_4, %c0_5] : memref<16x128xf32, #tpu.memory_space<vmem>>, vector<16x128xf32>
    tpu.vector_store %arg11[%c0_4, %c0_5], %12 {strides = array<i32>} : memref<16x128xf32, #tpu.memory_space<vmem>>, vector<16x128xf32>,
    %c0_i32_6 = arith.constant 0 : i32
    %14 = arith.index_cast %c0_i32_6 : i32 to index
    %c0_7 = arith.constant 0 : index
    %15 = vector.load %arg3[%14, %c0_7] : memref<1x128xi32, #tpu.memory_space<vmem>>, vector<1x128xi32>
    %16 = vector.broadcast %15 : vector<1x128xi32> to vector<128x128xi32>
    %17 = arith.cmpi eq, %10, %16 : vector<128x128xi32>
    %18 = arith.extui %17 : vector<128x128xi1> to vector<128x128xi32>
    %19 = arith.sitofp %18 : vector<128x128xi32> to vector<128x128xf32>
    %20 = arith.truncf %19 : vector<128x128xf32> to vector<128x128xbf16>
    %c128_i32_8 = arith.constant 128 : i32
    %21 = arith.muli %c0_i32_6, %c128_i32_8 : i32
    %22 = vector.broadcast %21 : i32 to vector<16x128xi32>
    %23 = arith.addi %22, %11 : vector<16x128xi32>
    %24 = vector.broadcast %3 : vector<16x1xi32> to vector<16x128xi32>
    %25 = arith.cmpi sge, %23, %24 : vector<16x128xi32>
    %26 = vector.broadcast %4 : vector<16x1xi32> to vector<16x128xi32>
    %27 = arith.cmpi slt, %23, %26 : vector<16x128xi32>
    %28 = arith.andi %25, %27 : vector<16x128xi1>
    %29 = arith.extui %28 : vector<16x128xi1> to vector<16x128xi32>
    %30 = arith.sitofp %29 : vector<16x128xi32> to vector<16x128xf32>
    %31 = arith.truncf %30 : vector<16x128xf32> to vector<16x128xbf16>
    %c0_9 = arith.constant 0 : index
    %c0_10 = arith.constant 0 : index
    %32 = vector.load %arg11[%c0_9, %c0_10] : memref<16x128xf32, #tpu.memory_space<vmem>>, vector<16x128xf32>
    %cst_11 = arith.constant dense<0.000000e+00> : vector<16x128xf32>
    %33 = tpu.matmul %31, %20, %cst_11 {dimension_numbers = #tpu.dot_dimension_numbers<[1], [1], [0], [0], [0, 0, 1, 0], [], []>} : vector<16x128xbf16>, vector<128x128xbf16>, vector<16x128xf32> -> vector<16x128xf32>
    %34 = arith.addf %32, %33 : vector<16x128xf32>
    %c0_12 = arith.constant 0 : index
    %c0_13 = arith.constant 0 : index
    %35 = vector.load %arg11[%c0_12, %c0_13] : memref<16x128xf32, #tpu.memory_space<vmem>>, vector<16x128xf32>
    tpu.vector_store %arg11[%c0_12, %c0_13], %34 {strides = array<i32>} : memref<16x128xf32, #tpu.memory_space<vmem>>, vector<16x128xf32>,
    %c1_i32 = arith.constant 1 : i32
    %c0_14 = arith.constant 0 : index
    %c0_15 = arith.constant 0 : index
    %36 = vector.load %arg10[%c0_14, %c0_15] : memref<16x128xf32, #tpu.memory_space<vmem>>, vector<16x128xf32>
    %c0_16 = arith.constant 0 : index
    %c0_17 = arith.constant 0 : index
    %37 = vector.load %arg11[%c0_16, %c0_17] : memref<16x128xf32, #tpu.memory_space<vmem>>, vector<16x128xf32>
    %c0_18 = arith.constant 0 : index
    %c0_19 = arith.constant 0 : index
    %38 = vector.load %arg6[%c0_18, %c0_19] : memref<128x128xf32, #tpu.memory_space<vmem>>, vector<128x128xf32>
    %cst_20 = arith.constant dense<0.000000e+00> : vector<16x128xf32>
    %39 = tpu.matmul %37, %38, %cst_20 {dimension_numbers = #tpu.dot_dimension_numbers<[1], [0], [0], [1], [0, 0, 1, 1], [], []>} : vector<16x128xf32>, vector<128x128xf32>, vector<16x128xf32> -> vector<16x128xf32>
    %40 = arith.addf %36, %39 : vector<16x128xf32>
    %c0_21 = arith.constant 0 : index
    %c0_22 = arith.constant 0 : index
    %41 = vector.load %arg10[%c0_21, %c0_22] : memref<16x128xf32, #tpu.memory_space<vmem>>, vector<16x128xf32>
    tpu.vector_store %arg10[%c0_21, %c0_22], %40 {strides = array<i32>} : memref<16x128xf32, #tpu.memory_space<vmem>>, vector<16x128xf32>,
    %c0_i32_23 = arith.constant 0 : i32
    %42 = arith.cmpi eq, %arg1, %c0_i32_23 : i32
    %43 = arith.extui %42 : i1 to i32
    %c0_i32_24 = arith.constant 0 : i32
    %44 = arith.cmpi ne, %43, %c0_i32_24 : i32
    scf.if %44 {
      %45 = arith.subi %4, %3 : vector<16x1xi32>
      %46 = arith.sitofp %45 : vector<16x1xi32> to vector<16x1xf32>
      %cst_25 = arith.constant 0.000000e+00 : f32
      %47 = vector.broadcast %cst_25 : f32 to vector<16x1xf32>
      %48 = arith.cmpf ogt, %46, %47 : vector<16x1xf32>
      %cst_26 = arith.constant 1.000000e+00 : f32
      %49 = vector.broadcast %cst_26 : f32 to vector<16x1xf32>
      %50 = arith.divf %49, %46 : vector<16x1xf32>
      %cst_27 = arith.constant 0.000000e+00 : f32
      %51 = vector.broadcast %cst_27 : f32 to vector<16x1xf32>
      %52 = arith.select %48, %50, %51 : vector<16x1xi1>, vector<16x1xf32>
      %c0_28 = arith.constant 0 : index
      %c0_29 = arith.constant 0 : index
      %53 = vector.load %arg10[%c0_28, %c0_29] : memref<16x128xf32, #tpu.memory_space<vmem>>, vector<16x128xf32>
      %54 = vector.broadcast %52 : vector<16x1xf32> to vector<16x128xf32>
      %55 = arith.mulf %53, %54 : vector<16x128xf32>
      %c0_30 = arith.constant 0 : index
      %c0_31 = arith.constant 0 : index
      %56 = vector.load %arg7[%c0_30, %c0_31] : memref<128x128xf32, #tpu.memory_space<vmem>>, vector<128x128xf32>
      %cst_32 = arith.constant dense<0.000000e+00> : vector<16x128xf32>
      %57 = tpu.matmul %55, %56, %cst_32 {dimension_numbers = #tpu.dot_dimension_numbers<[1], [0], [0], [1], [0, 0, 1, 1], [], []>} : vector<16x128xf32>, vector<128x128xf32>, vector<16x128xf32> -> vector<16x128xf32>
      %c0_33 = arith.constant 0 : index
      %c0_34 = arith.constant 0 : index
      %58 = vector.load %arg8[%c0_33, %c0_34] : memref<1x128xf32, #tpu.memory_space<vmem>>, vector<1x128xf32>
      %59 = vector.broadcast %58 : vector<1x128xf32> to vector<16x128xf32>
      %60 = arith.addf %57, %59 : vector<16x128xf32>
      %c0_35 = arith.constant 0 : index
      %c0_36 = arith.constant 0 : index
      %61 = vector.load %arg9[%c0_35, %c0_36] : memref<16x128xf32, #tpu.memory_space<vmem>>, vector<16x128xf32>
      tpu.vector_store %arg9[%c0_35, %c0_36], %60 {strides = array<i32>} : memref<16x128xf32, #tpu.memory_space<vmem>>, vector<16x128xf32>,
    } else {
    }
    return
  }
  func.func @transform_0(%arg0: i32, %arg1: i32, %arg2: memref<1xi32, #tpu.memory_space<smem>>) -> (i32, i32) {
    %c0_i32 = arith.constant 0 : i32
    %c0_i32_0 = arith.constant 0 : i32
    %c0_i32_1 = arith.constant 0 : i32
    return %c0_i32, %c0_i32_0 : i32, i32
  }
  func.func @transform_1(%arg0: i32, %arg1: i32, %arg2: memref<1xi32, #tpu.memory_space<smem>>) -> (i32, i32) {
    %c0_i32 = arith.constant 0 : i32
    %c0_i32_0 = arith.constant 0 : i32
    return %arg0, %c0_i32 : i32, i32
  }
  func.func @transform_2(%arg0: i32, %arg1: i32, %arg2: memref<1xi32, #tpu.memory_space<smem>>) -> (i32, i32) {
    %c0_i32 = arith.constant 0 : i32
    %c0_i32_0 = arith.constant 0 : i32
    return %arg0, %c0_i32 : i32, i32
  }
  func.func @transform_3(%arg0: i32, %arg1: i32, %arg2: memref<1xi32, #tpu.memory_space<smem>>) -> (i32, i32) {
    %0 = arith.index_cast %arg1 : i32 to index
    %1 = memref.load %arg2[%0] : memref<1xi32, #tpu.memory_space<smem>>
    %c0_i32 = arith.constant 0 : i32
    %c0_i32_0 = arith.constant 0 : i32
    return %1, %c0_i32 : i32, i32
  }
  func.func @transform_4(%arg0: i32, %arg1: i32, %arg2: memref<1xi32, #tpu.memory_space<smem>>) -> (i32, i32) {
    %c0_i32 = arith.constant 0 : i32
    %c0_i32_0 = arith.constant 0 : i32
    %c0_i32_1 = arith.constant 0 : i32
    return %c0_i32, %c0_i32_0 : i32, i32
  }
  func.func @transform_5(%arg0: i32, %arg1: i32, %arg2: memref<1xi32, #tpu.memory_space<smem>>) -> (i32, i32) {
    %c0_i32 = arith.constant 0 : i32
    %c0_i32_0 = arith.constant 0 : i32
    %c0_i32_1 = arith.constant 0 : i32
    return %c0_i32, %c0_i32_0 : i32, i32
  }
  func.func @transform_6(%arg0: i32, %arg1: i32, %arg2: memref<1xi32, #tpu.memory_space<smem>>) -> (i32, i32) {
    %c0_i32 = arith.constant 0 : i32
    %c0_i32_0 = arith.constant 0 : i32
    return %arg0, %c0_i32 : i32, i32
  }
}

</mosaic_0001>

<llo_original>
// kernel: tpu_custom_call.1
$region0: #{tpu_custom_call.1}
  #allocation0 [shape = 'u32[]', space=smem, size = 0x4, offset = 0x4, fixed_abs, tag = 'smem constant byte address 0x4 - core index']
  #allocation1 [shape = 'u32[144,128]{1,0:T(1,128)}', space=vmem, size = 0x12000, scoped, tag = 'internal scratch']
  #allocation2 [shape = 'f32[16,128]{1,0:T(8,128)}', space=vmem, size = 0x2000, scoped, tag = 'scratch operand']
  #allocation3 [shape = 'f32[16,128]{1,0:T(8,128)}', space=vmem, size = 0x2000, scoped, tag = 'scratch operand']
  #allocation4 [shape = 's32[1]{0}', space=sflag, size = 0x4, scoped, tag = 'scoped memory for tpu_custom_call.1']
  #allocation5 [shape = 's32[1]{0:T(128)S(6)}', space=smem, size = 0x200, scoped, tag = 'prefetched SMEM operand 0']
  %s0 = inlined_call_operand.<no memory space> [shape: s32[1], index: 0, kind: input, shape index: {}]
  %s1 = inlined_call_operand.vmem [shape: s32[1,128], index: 1, kind: input, shape index: {}]
  %s2 = inlined_call_operand.vmem [shape: s32[16,1], index: 2, kind: input, shape index: {}]
  %s3 = inlined_call_operand.vmem [shape: s32[16,1], index: 3, kind: input, shape index: {}]
  %s4 = inlined_call_operand.hbm [shape: f32[128,128], index: 4, kind: input, shape index: {}]
  %s5 = inlined_call_operand.hbm [shape: f32[128,128], index: 5, kind: input, shape index: {}]
  %s6 = inlined_call_operand.vmem [shape: f32[1,128], index: 6, kind: input, shape index: {}]
  %s7 = inlined_call_operand.hbm [shape: f32[16,128], index: 7, kind: output, shape index: {}]
  %s8 = sld [smem:[#allocation0]]
  $region50: #{tpu_custom_call.1} parent=0
    _
  %s10 = ssub.s32 1, %s8
  %s11 = scalar_select 0, %s10, %s8
  %12 = sst [smem:[#allocation5]] %s0
  $region1: #{tpu_custom_call.1} parent=0
    #allocation6 [shape = 'u8[65536]{0}', space=vmem, size = 0x10000, scoped, tag = 'input window, operand 4, single buffered']
    #allocation7 [shape = 's32[1]{0}', space=sflag, size = 0x4, scoped, tag = 'scoped memory for tpu_custom_call.1']
    #allocation8 [shape = 's32[1]{0}', space=sflag, size = 0x4, scoped, tag = 'scoped memory for tpu_custom_call.1']
    #allocation9 [shape = 'u8[65536]{0}', space=vmem, size = 0x10000, scoped, tag = 'input window, operand 5, single buffered']
    #allocation10 [shape = 's32[1]{0}', space=sflag, size = 0x4, scoped, tag = 'scoped memory for tpu_custom_call.1']
    #allocation11 [shape = 'u8[8192]{0}', space=vmem, size = 0x2000, scoped, tag = 'output window, operand 0, single buffered']
    %13 = vsyncpa [#allocation7], 0
    %14 = vsyncpa [#allocation10], 0
    %15 = vsyncpa [#allocation8], 0
    // Predicated region
    $region2: #{tpu_custom_call.1} parent=1 // pred_check
      _
    $region3: #{tpu_custom_call.1} parent=1 // pred_check_branch
      %17 = sbr.rel (0) target = $region5
    $region4: #{tpu_custom_call.1} parent=1 // pred_region
      _
    $region5: #{tpu_custom_call.1} parent=1 // pred_fallthru
      _
    // Predicated region
    $region6: #{tpu_custom_call.1} parent=1 // pred_check
      _
    $region7: #{tpu_custom_call.1} parent=1 // pred_check_branch
      %19 = sbr.rel (0) target = $region9
    $region8: #{tpu_custom_call.1} parent=1 // pred_region
      _
    $region9: #{tpu_custom_call.1} parent=1 // pred_fallthru
      _
    // Predicated region
    $region10: #{tpu_custom_call.1} parent=1 // pred_check
      _
    $region11: #{tpu_custom_call.1} parent=1 // pred_check_branch
      %21 = sbr.rel (0) target = $region13
    $region12: #{tpu_custom_call.1} parent=1 // pred_region
      _
    $region13: #{tpu_custom_call.1} parent=1 // pred_fallthru
      _
    // Predicated region
    $region14: #{tpu_custom_call.1} parent=1 // pred_check
      _
    $region15: #{tpu_custom_call.1} parent=1 // pred_check_branch
      %23 = sbr.rel (0) target = $region17
    $region16: #{tpu_custom_call.1} parent=1 // pred_region
      %s24 = sld [smem:[#allocation5]]
      %s25 = smul.u32 16, %s24
      %s27 = ssub.s32 2048, 2048
      %28 = vsyncadd [#allocation7], %s27
      %s29 = smul.addr %s25, 128
      %s30 = scalar_lea.hbm %s4, %s29
      %s31 = sshll.u32 [#allocation6], 4
      %s32 = int_to_ptr.vmem [resolvable:$true] %s31
      %37 = dma.hbm_to_vmem [thread:$0]  %s30, 2048, %s32, [#allocation7], 128, 128, 8
    $region17: #{tpu_custom_call.1} parent=1 // pred_fallthru
      _
    // Predicated region
    $region18: #{tpu_custom_call.1} parent=1 // pred_check
      _
    $region19: #{tpu_custom_call.1} parent=1 // pred_check_branch
      %39 = sbr.rel (0) target = $region21
    $region20: #{tpu_custom_call.1} parent=1 // pred_region
      %s41 = ssub.s32 2048, 2048
      %42 = vsyncadd [#allocation10], %s41
      %s43 = sshll.u32 [#allocation9], 4
      %s44 = int_to_ptr.vmem [resolvable:$true] %s43
      %49 = dma.hbm_to_vmem [thread:$0]  %s5, 2048, %s44, [#allocation10], 128, 128, 8
    $region21: #{tpu_custom_call.1} parent=1 // pred_fallthru
      _
    // Predicated region
    $region22: #{tpu_custom_call.1} parent=1 // pred_check
      _
    $region23: #{tpu_custom_call.1} parent=1 // pred_check_branch
      %51 = sbr.rel (0) target = $region25
    $region24: #{tpu_custom_call.1} parent=1 // pred_region
      _
    $region25: #{tpu_custom_call.1} parent=1 // pred_fallthru
      _
    // Predicated region
    $region26: #{tpu_custom_call.1} parent=1 // pred_check
      _
    $region27: #{tpu_custom_call.1} parent=1 // pred_check_branch
      %53 = sbr.rel (0) target = $region29
    $region28: #{tpu_custom_call.1} parent=1 // pred_region
      %54 = dma.done [#allocation7], 2048
    $region29: #{tpu_custom_call.1} parent=1 // pred_fallthru
      _
    // Predicated region
    $region30: #{tpu_custom_call.1} parent=1 // pred_check
      _
    $region31: #{tpu_custom_call.1} parent=1 // pred_check_branch
      %56 = sbr.rel (0) target = $region33
    $region32: #{tpu_custom_call.1} parent=1 // pred_region
      %57 = dma.done [#allocation10], 2048
    $region33: #{tpu_custom_call.1} parent=1 // pred_fallthru
      _
    %s58 = sld [smem:[#allocation5]]
    %s59 = smul.u32 16, %s58
    %p61 = scmp.eq.s32.totalorder 0, 0
    // Predicated region
    $region34: #{tpu_custom_call.1} parent=1 // pred_check
      %p62 = pneg %p61
    $region35: #{tpu_custom_call.1} parent=1 // pred_check_branch
      %64 = sbr.rel (%p62) target = $region37
    $region36: #{tpu_custom_call.1} parent=1 // pred_region
      %65 = vst [vmem:[#allocation2] sm:$0xff] 0.0
      %66 = vst [vmem:[#allocation2 + $0x8] sm:$0xff] 0.0
    $region37: #{tpu_custom_call.1} parent=1 // pred_fallthru
      _
    %v67 = vld [vmem:[%s2] sm:$0xff]
    %v68 = vld [vmem:[%s2 + $0x8] sm:$0xff]
    %v69 = vld [vmem:[%s3] sm:$0xff]
    %v70 = vld [vmem:[%s3 + $0x8] sm:$0xff]
    %s71 = sld [smem:[#allocation5]]
    %s72 = smul.u32 %s71, 128
    %v73 = vlaneseq
    %v74 = vshrl.u32 %v73, 7
    %v75 = vadd.s32 %v74, 8
    %v76 = vadd.s32 %v74, 16
    %v77 = vadd.s32 %v74, 24
    %v78 = vadd.s32 %v74, 32
    %v79 = vadd.s32 %v74, 40
    %v80 = vadd.s32 %v74, 48
    %v81 = vadd.s32 %v74, 56
    %v82 = vadd.s32 %v74, 64
    %v83 = vadd.s32 %v74, 72
    %v84 = vadd.s32 %v74, 80
    %v85 = vadd.s32 %v74, 88
    %v86 = vadd.s32 %v74, 96
    %v87 = vadd.s32 %v74, 104
    %v88 = vadd.s32 %v74, 112
    %v89 = vadd.s32 %v74, 120
    %v90 = vstv %s72
    %v91 = vadd.s32 %v90, %v74
    %v92 = vadd.s32 %v90, %v75
    %v93 = vadd.s32 %v90, %v76
    %v94 = vadd.s32 %v90, %v77
    %v95 = vadd.s32 %v90, %v78
    %v96 = vadd.s32 %v90, %v79
    %v97 = vadd.s32 %v90, %v80
    %v98 = vadd.s32 %v90, %v81
    %v99 = vadd.s32 %v90, %v82
    %v100 = vadd.s32 %v90, %v83
    %v101 = vadd.s32 %v90, %v84
    %v102 = vadd.s32 %v90, %v85
    %v103 = vadd.s32 %v90, %v86
    %v104 = vadd.s32 %v90, %v87
    %v105 = vadd.s32 %v90, %v88
    %v106 = vadd.s32 %v90, %v89
    %v107 = vlaneseq
    %v108 = vand.u32 %v107, 127
    %109 = vst [vmem:[#allocation3] sm:$0xff] 0.0
    %110 = vst [vmem:[#allocation3 + $0x8] sm:$0xff] 0.0
    %v111 = vld [vmem:[%s1] sm:$0x1]
    %v112 = vlaneseq
    %v113 = vshrl.u32 %v112, 7
    %v114 = vsub.s32 0, %v113
    %v115 = vrot.slane %v111, %v114
    %vm116 = vcmp.eq.s32.totalorder %v91, %v115
    %vm117 = vcmp.eq.s32.totalorder %v92, %v115
    %vm118 = vcmp.eq.s32.totalorder %v93, %v115
    %vm119 = vcmp.eq.s32.totalorder %v94, %v115
    %vm120 = vcmp.eq.s32.totalorder %v95, %v115
    %vm121 = vcmp.eq.s32.totalorder %v96, %v115
    %vm122 = vcmp.eq.s32.totalorder %v97, %v115
    %vm123 = vcmp.eq.s32.totalorder %v98, %v115
    %vm124 = vcmp.eq.s32.totalorder %v99, %v115
    %vm125 = vcmp.eq.s32.totalorder %v100, %v115
    %vm126 = vcmp.eq.s32.totalorder %v101, %v115
    %vm127 = vcmp.eq.s32.totalorder %v102, %v115
    %vm128 = vcmp.eq.s32.totalorder %v103, %v115
    %vm129 = vcmp.eq.s32.totalorder %v104, %v115
    %vm130 = vcmp.eq.s32.totalorder %v105, %v115
    %vm131 = vcmp.eq.s32.totalorder %v106, %v115
    %v132 = vsel %vm116, 1, 0
    %v133 = vsel %vm117, 1, 0
    %v134 = vsel %vm118, 1, 0
    %v135 = vsel %vm119, 1, 0
    %v136 = vsel %vm120, 1, 0
    %v137 = vsel %vm121, 1, 0
    %v138 = vsel %vm122, 1, 0
    %v139 = vsel %vm123, 1, 0
    %v140 = vsel %vm124, 1, 0
    %v141 = vsel %vm125, 1, 0
    %v142 = vsel %vm126, 1, 0
    %v143 = vsel %vm127, 1, 0
    %v144 = vsel %vm128, 1, 0
    %v145 = vsel %vm129, 1, 0
    %v146 = vsel %vm130, 1, 0
    %v147 = vsel %vm131, 1, 0
    %v148 = vcvt.s32.f32 %v132
    %v149 = vcvt.s32.f32 %v133
    %v150 = vcvt.s32.f32 %v134
    %v151 = vcvt.s32.f32 %v135
    %v152 = vcvt.s32.f32 %v136
    %v153 = vcvt.s32.f32 %v137
    %v154 = vcvt.s32.f32 %v138
    %v155 = vcvt.s32.f32 %v139
    %v156 = vcvt.s32.f32 %v140
    %v157 = vcvt.s32.f32 %v141
    %v158 = vcvt.s32.f32 %v142
    %v159 = vcvt.s32.f32 %v143
    %v160 = vcvt.s32.f32 %v144
    %v161 = vcvt.s32.f32 %v145
    %v162 = vcvt.s32.f32 %v146
    %v163 = vcvt.s32.f32 %v147
    %v164 = vpack.c.bf16 %v149, %v148
    %v165 = vpack.c.bf16 %v151, %v150
    %v166 = vpack.c.bf16 %v153, %v152
    %v167 = vpack.c.bf16 %v155, %v154
    %v168 = vpack.c.bf16 %v157, %v156
    %v169 = vpack.c.bf16 %v159, %v158
    %v170 = vpack.c.bf16 %v161, %v160
    %v171 = vpack.c.bf16 %v163, %v162
    %172 = vset.pattern.permute.xlu0 0
    %173 = vperm.xlu0 %172, %v67
    %v174 = vpop.permute.xlu0 %173
    %175 = vset.pattern.permute.xlu0 0
    %176 = vperm.xlu0 %175, %v68
    %v177 = vpop.permute.xlu0 %176
    %vm178 = vcmp.ge.s32.totalorder %v108, %v174
    %vm179 = vcmp.ge.s32.totalorder %v108, %v177
    %180 = vset.pattern.permute.xlu0 0
    %181 = vperm.xlu0 %180, %v69
    %v182 = vpop.permute.xlu0 %181
    %183 = vset.pattern.permute.xlu0 0
    %184 = vperm.xlu0 %183, %v70
    %v185 = vpop.permute.xlu0 %184
    %vm186 = vcmp.lt.s32.totalorder %v108, %v182
    %vm187 = vcmp.lt.s32.totalorder %v108, %v185
    %vm188 = vmand %vm178, %vm186
    %vm189 = vmand %vm179, %vm187
    %v190 = vsel %vm188, 1, 0
    %v191 = vsel %vm189, 1, 0
    %v192 = vcvt.s32.f32 %v190
    %v193 = vcvt.s32.f32 %v191
    %v194 = vpack.c.bf16 %v193, %v192
    %v195 = vld [vmem:[#allocation3] sm:$0xff]
    %v196 = vld [vmem:[#allocation3 + $0x8] sm:$0xff]
    %197 = vmatprep.subr.bf16.mxu0 0
    %198 = vmatpush1.bf16.xpose.msra.mxu0 %v171
    %199 = vmatprep.subr.bf16.mxu0 0
    %200 = vmatpush1.bf16.xpose.msra.mxu0 %v170
    %201 = vmatprep.subr.bf16.mxu0 0
    %202 = vmatpush1.bf16.xpose.msra.mxu0 %v169
    %203 = vmatprep.subr.bf16.mxu0 0
    %204 = vmatpush1.bf16.xpose.msra.mxu0 %v168
    %205 = vmatprep.subr.bf16.mxu0 0
    %206 = vmatpush1.bf16.xpose.msra.mxu0 %v167
    %207 = vmatprep.subr.bf16.mxu0 0
    %208 = vmatpush1.bf16.xpose.msra.mxu0 %v166
    %209 = vmatprep.subr.bf16.mxu0 0
    %210 = vmatpush1.bf16.xpose.msra.mxu0 %v165
    %211 = vmatprep.subr.bf16.mxu0 0
    %212 = vmatpush1.bf16.xpose.msra.mxu0 %v164
    %213 = vmatprep.subr.bf16.mxu0 0
    %214 = vmatpush2.bf16.xpose.msra.mxu0 0
    %215 = vmatprep.subr.bf16.mxu0 0
    %216 = vmatpush2.bf16.xpose.msra.mxu0 0
    %217 = vmatprep.subr.bf16.mxu0 0
    %218 = vmatpush2.bf16.xpose.msra.mxu0 0
    %219 = vmatprep.subr.bf16.mxu0 0
    %220 = vmatpush2.bf16.xpose.msra.mxu0 0
    %221 = vmatprep.subr.bf16.mxu0 0
    %222 = vmatpush2.bf16.xpose.msra.mxu0 0
    %223 = vmatprep.subr.bf16.mxu0 0
    %224 = vmatpush2.bf16.xpose.msra.mxu0 0
    %225 = vmatprep.subr.bf16.mxu0 0
    %226 = vmatpush2.bf16.xpose.msra.mxu0 0
    %227 = vmatprep.subr.bf16.mxu0 0
    %228 = vmatpush2.bf16.xpose.msra.mxu0 0
    %229 = vmatprep.mubr.bf16.mxu0 0
    %230 = vmatmul.mubr.bf16.gmra.mxu0 %v194
    %v231 = vpop.f32.mrf.mxu0
    %v232 = vadd.f32 0.0, %v231
    %v233 = vpop.f32.mrf.mxu0
    %v234 = vpop.f32.mrf.mxu0
    %v235 = vadd.f32 0.0, %v234
    %v236 = vpop.f32.mrf.mxu0
    %237 = vdwg.mxu0
    %v238 = vadd.f32 %v195, %v232
    %v239 = vadd.f32 %v196, %v235
    %240 = vst [vmem:[#allocation3] sm:$0xff] %v238
    %241 = vst [vmem:[#allocation3 + $0x8] sm:$0xff] %v239
    %v242 = vld [vmem:[#allocation2] sm:$0xff]
    %v243 = vld [vmem:[#allocation2 + $0x8] sm:$0xff]
    %v244 = vld [vmem:[#allocation3] sm:$0xff]
    %v245 = vld [vmem:[#allocation3 + $0x8] sm:$0xff]
    %v246 = vld [vmem:[#allocation6] sm:$0xff]
    %v247 = vld [vmem:[#allocation6 + $0x8] sm:$0xff]
    %v248 = vld [vmem:[#allocation6 + $0x10] sm:$0xff]
    %v249 = vld [vmem:[#allocation6 + $0x18] sm:$0xff]
    %v250 = vld [vmem:[#allocation6 + $0x20] sm:$0xff]
    %v251 = vld [vmem:[#allocation6 + $0x28] sm:$0xff]
    %v252 = vld [vmem:[#allocation6 + $0x30] sm:$0xff]
    %v253 = vld [vmem:[#allocation6 + $0x38] sm:$0xff]
    %v254 = vld [vmem:[#allocation6 + $0x40] sm:$0xff]
    %v255 = vld [vmem:[#allocation6 + $0x48] sm:$0xff]
    %v256 = vld [vmem:[#allocation6 + $0x50] sm:$0xff]
    %v257 = vld [vmem:[#allocation6 + $0x58] sm:$0xff]
    %v258 = vld [vmem:[#allocation6 + $0x60] sm:$0xff]
    %v259 = vld [vmem:[#allocation6 + $0x68] sm:$0xff]
    %v260 = vld [vmem:[#allocation6 + $0x70] sm:$0xff]
    %v261 = vld [vmem:[#allocation6 + $0x78] sm:$0xff]
    %262 = vmatprep.subr.mxu0 0.0
    %263 = vmatpush1.msra.mxu0 %v261
    %264 = vmatprep.subr.mxu0 0.0
    %265 = vmatpush1.msra.mxu0 %v260
    %266 = vmatprep.subr.mxu0 0.0
    %267 = vmatpush1.msra.mxu0 %v259
    %268 = vmatprep.subr.mxu0 0.0
    %269 = vmatpush1.msra.mxu0 %v258
    %270 = vmatprep.subr.mxu0 0.0
    %271 = vmatpush1.msra.mxu0 %v257
    %272 = vmatprep.subr.mxu0 0.0
    %273 = vmatpush1.msra.mxu0 %v256
    %274 = vmatprep.subr.mxu0 0.0
    %275 = vmatpush1.msra.mxu0 %v255
    %276 = vmatprep.subr.mxu0 0.0
    %277 = vmatpush1.msra.mxu0 %v254
    %278 = vmatprep.subr.mxu0 0.0
    %279 = vmatpush1.msra.mxu0 %v253
    %280 = vmatprep.subr.mxu0 0.0
    %281 = vmatpush1.msra.mxu0 %v252
    %282 = vmatprep.subr.mxu0 0.0
    %283 = vmatpush1.msra.mxu0 %v251
    %284 = vmatprep.subr.mxu0 0.0
    %285 = vmatpush1.msra.mxu0 %v250
    %286 = vmatprep.subr.mxu0 0.0
    %287 = vmatpush1.msra.mxu0 %v249
    %288 = vmatprep.subr.mxu0 0.0
    %289 = vmatpush1.msra.mxu0 %v248
    %290 = vmatprep.subr.mxu0 0.0
    %291 = vmatpush1.msra.mxu0 %v247
    %292 = vmatprep.subr.mxu0 0.0
    %293 = vmatpush1.msra.mxu0 %v246
    %294 = vmatprep.subr.mxu0 0.0
    %295 = vmatpush2.msra.mxu0 0.0
    %296 = vmatprep.subr.mxu0 0.0
    %297 = vmatpush2.msra.mxu0 0.0
    %298 = vmatprep.subr.mxu0 0.0
    %299 = vmatpush2.msra.mxu0 0.0
    %300 = vmatprep.subr.mxu0 0.0
    %301 = vmatpush2.msra.mxu0 0.0
    %302 = vmatprep.subr.mxu0 0.0
    %303 = vmatpush2.msra.mxu0 0.0
    %304 = vmatprep.subr.mxu0 0.0
    %305 = vmatpush2.msra.mxu0 0.0
    %306 = vmatprep.subr.mxu0 0.0
    %307 = vmatpush2.msra.mxu0 0.0
    %308 = vmatprep.subr.mxu0 0.0
    %309 = vmatpush2.msra.mxu0 0.0
    %310 = vmatprep.subr.mxu0 0.0
    %311 = vmatpush2.msra.mxu0 0.0
    %312 = vmatprep.subr.mxu0 0.0
    %313 = vmatpush2.msra.mxu0 0.0
    %314 = vmatprep.subr.mxu0 0.0
    %315 = vmatpush2.msra.mxu0 0.0
    %316 = vmatprep.subr.mxu0 0.0
    %317 = vmatpush2.msra.mxu0 0.0
    %318 = vmatprep.subr.mxu0 0.0
    %319 = vmatpush2.msra.mxu0 0.0
    %320 = vmatprep.subr.mxu0 0.0
    %321 = vmatpush2.msra.mxu0 0.0
    %322 = vmatprep.subr.mxu0 0.0
    %323 = vmatpush2.msra.mxu0 0.0
    %324 = vmatprep.subr.mxu0 0.0
    %325 = vmatpush2.msra.mxu0 0.0
    %326 = vmatprep.mubr.f32.mxu0 0.0
    %327 = vmatmul.mubr.f32.gmra.mxu0 %v244
    %v328 = vpop.f32.mrf.mxu0
    %v329 = vadd.f32 0.0, %v328
    %v330 = vpop.f32.mrf.mxu0
    %331 = vmatprep.mubr.f32.mxu0 0.0
    %332 = vmatmul.mubr.f32.gmra.mxu0 %v245
    %v333 = vpop.f32.mrf.mxu0
    %v334 = vadd.f32 0.0, %v333
    %v335 = vpop.f32.mrf.mxu0
    %336 = vdwg.mxu0
    %v337 = vadd.f32 %v242, %v329
    %v338 = vadd.f32 %v243, %v334
    %339 = vst [vmem:[#allocation2] sm:$0xff] %v337
    %340 = vst [vmem:[#allocation2 + $0x8] sm:$0xff] %v338
    // Predicated region
    $region38: #{tpu_custom_call.1} parent=1 // pred_check
      %p341 = pneg %p61
    $region39: #{tpu_custom_call.1} parent=1 // pred_check_branch
      %343 = sbr.rel (%p341) target = $region41
    $region40: #{tpu_custom_call.1} parent=1 // pred_region
      %v344 = vsub.s32 %v69, %v67
      %v345 = vsub.s32 %v70, %v68
      %v346 = vcvt.s32.f32 %v344
      %v347 = vcvt.s32.f32 %v345
      %vm348 = vcmp.gt.f32.partialorder %v346, 0.0
      %vm349 = vcmp.gt.f32.partialorder %v347, 0.0
      %v350 = vrcp.pop %v346
      %v351 = vmul.f32 1.0, %v350
      %v352 = vrcp.pop %v347
      %v353 = vmul.f32 1.0, %v352
      %v354 = vsel %vm348, %v351, 0.0
      %v355 = vsel %vm349, %v353, 0.0
      %v356 = vld [vmem:[#allocation2] sm:$0xff]
      %v357 = vld [vmem:[#allocation2 + $0x8] sm:$0xff]
      %359 = vset.pattern.permute.xlu0 0
      %360 = vperm.xlu0 %359, %v354
      %v361 = vpop.permute.xlu0 %360
      %364 = vset.pattern.permute.xlu0 0
      %365 = vperm.xlu0 %364, %v355
      %v366 = vpop.permute.xlu0 %365
      %v368 = vmul.f32 %v356, %v361
      %v369 = vmul.f32 %v357, %v366
      %v370 = vld [vmem:[#allocation9] sm:$0xff]
      %v371 = vld [vmem:[#allocation9 + $0x8] sm:$0xff]
      %v372 = vld [vmem:[#allocation9 + $0x10] sm:$0xff]
      %v373 = vld [vmem:[#allocation9 + $0x18] sm:$0xff]
      %v374 = vld [vmem:[#allocation9 + $0x20] sm:$0xff]
      %v375 = vld [vmem:[#allocation9 + $0x28] sm:$0xff]
      %v376 = vld [vmem:[#allocation9 + $0x30] sm:$0xff]
      %v377 = vld [vmem:[#allocation9 + $0x38] sm:$0xff]
      %v378 = vld [vmem:[#allocation9 + $0x40] sm:$0xff]
      %v379 = vld [vmem:[#allocation9 + $0x48] sm:$0xff]
      %v380 = vld [vmem:[#allocation9 + $0x50] sm:$0xff]
      %v381 = vld [vmem:[#allocation9 + $0x58] sm:$0xff]
      %v382 = vld [vmem:[#allocation9 + $0x60] sm:$0xff]
      %v383 = vld [vmem:[#allocation9 + $0x68] sm:$0xff]
      %v384 = vld [vmem:[#allocation9 + $0x70] sm:$0xff]
      %v385 = vld [vmem:[#allocation9 + $0x78] sm:$0xff]
      %v386 = vld [vmem:[%s6] sm:$0x1]
      %v388 = vlaneseq
      %v389 = vshrl.u32 %v388, 7
      %v390 = vsub.s32 0, %v389
      %v391 = vrot.slane %v386, %v390
      %393 = vmatprep.subr.mxu0 0.0
      %394 = vmatpush1.msra.mxu0 %v385
      %395 = vmatprep.subr.mxu0 0.0
      %396 = vmatpush1.msra.mxu0 %v384
      %397 = vmatprep.subr.mxu0 0.0
      %398 = vmatpush1.msra.mxu0 %v383
      %399 = vmatprep.subr.mxu0 0.0
      %400 = vmatpush1.msra.mxu0 %v382
      %401 = vmatprep.subr.mxu0 0.0
      %402 = vmatpush1.msra.mxu0 %v381
      %403 = vmatprep.subr.mxu0 0.0
      %404 = vmatpush1.msra.mxu0 %v380
      %405 = vmatprep.subr.mxu0 0.0
      %406 = vmatpush1.msra.mxu0 %v379
      %407 = vmatprep.subr.mxu0 0.0
      %408 = vmatpush1.msra.mxu0 %v378
      %409 = vmatprep.subr.mxu0 0.0
      %410 = vmatpush1.msra.mxu0 %v377
      %411 = vmatprep.subr.mxu0 0.0
      %412 = vmatpush1.msra.mxu0 %v376
      %413 = vmatprep.subr.mxu0 0.0
      %414 = vmatpush1.msra.mxu0 %v375
      %415 = vmatprep.subr.mxu0 0.0
      %416 = vmatpush1.msra.mxu0 %v374
      %417 = vmatprep.subr.mxu0 0.0
      %418 = vmatpush1.msra.mxu0 %v373
      %419 = vmatprep.subr.mxu0 0.0
      %420 = vmatpush1.msra.mxu0 %v372
      %421 = vmatprep.subr.mxu0 0.0
      %422 = vmatpush1.msra.mxu0 %v371
      %423 = vmatprep.subr.mxu0 0.0
      %424 = vmatpush1.msra.mxu0 %v370
      %425 = vmatprep.subr.mxu0 0.0
      %426 = vmatpush2.msra.mxu0 0.0
      %427 = vmatprep.subr.mxu0 0.0
      %428 = vmatpush2.msra.mxu0 0.0
      %429 = vmatprep.subr.mxu0 0.0
      %430 = vmatpush2.msra.mxu0 0.0
      %431 = vmatprep.subr.mxu0 0.0
      %432 = vmatpush2.msra.mxu0 0.0
      %433 = vmatprep.subr.mxu0 0.0
      %434 = vmatpush2.msra.mxu0 0.0
      %435 = vmatprep.subr.mxu0 0.0
      %436 = vmatpush2.msra.mxu0 0.0
      %437 = vmatprep.subr.mxu0 0.0
      %438 = vmatpush2.msra.mxu0 0.0
      %439 = vmatprep.subr.mxu0 0.0
      %440 = vmatpush2.msra.mxu0 0.0
      %441 = vmatprep.subr.mxu0 0.0
      %442 = vmatpush2.msra.mxu0 0.0
      %443 = vmatprep.subr.mxu0 0.0
      %444 = vmatpush2.msra.mxu0 0.0
      %445 = vmatprep.subr.mxu0 0.0
      %446 = vmatpush2.msra.mxu0 0.0
      %447 = vmatprep.subr.mxu0 0.0
      %448 = vmatpush2.msra.mxu0 0.0
      %449 = vmatprep.subr.mxu0 0.0
      %450 = vmatpush2.msra.mxu0 0.0
      %451 = vmatprep.subr.mxu0 0.0
      %452 = vmatpush2.msra.mxu0 0.0
      %453 = vmatprep.subr.mxu0 0.0
      %454 = vmatpush2.msra.mxu0 0.0
      %455 = vmatprep.subr.mxu0 0.0
      %456 = vmatpush2.msra.mxu0 0.0
      %457 = vmatprep.mubr.f32.mxu0 0.0
      %458 = vmatmul.mubr.f32.gmra.mxu0 %v368
      %v459 = vpop.f32.mrf.mxu0
      %v460 = vadd.f32 %v391, %v459
      %v461 = vpop.f32.mrf.mxu0
      %462 = vmatprep.mubr.f32.mxu0 0.0
      %463 = vmatmul.mubr.f32.gmra.mxu0 %v369
      %v464 = vpop.f32.mrf.mxu0
      %v465 = vadd.f32 %v391, %v464
      %v466 = vpop.f32.mrf.mxu0
      %467 = vdwg.mxu0
      %468 = vst [vmem:[#allocation11] sm:$0xff] %v460
      %469 = vst [vmem:[#allocation11 + $0x8] sm:$0xff] %v465
    $region41: #{tpu_custom_call.1} parent=1 // pred_fallthru
      _
    // Predicated region
    $region42: #{tpu_custom_call.1} parent=1 // pred_check
      _
    $region43: #{tpu_custom_call.1} parent=1 // pred_check_branch
      %471 = sbr.rel (0) target = $region45
    $region44: #{tpu_custom_call.1} parent=1 // pred_region
      %s473 = ssub.s32 256, 256
      %474 = vsyncadd [#allocation8], %s473
      %s475 = sshll.u32 [#allocation11], 4
      %s476 = int_to_ptr.vmem [resolvable:$true] %s475
      %481 = dma.vmem_to_hbm [thread:$0]  %s476, 256, %s7, [#allocation8], 128, 128, 8
    $region45: #{tpu_custom_call.1} parent=1 // pred_fallthru
      _
    // Predicated region
    $region46: #{tpu_custom_call.1} parent=1 // pred_check
      _
    $region47: #{tpu_custom_call.1} parent=1 // pred_check_branch
      %483 = sbr.rel (0) target = $region49
    $region48: #{tpu_custom_call.1} parent=1 // pred_region
      %484 = dma.done [#allocation8], 256
    $region49: #{tpu_custom_call.1} parent=1 // pred_fallthru
      _
    %485 = vsyncpa [#allocation7], 1
    %486 = vsyncpa [#allocation10], 1
    %487 = vsyncpa [#allocation8], 1

</llo_original>
